<compile_context>
chip_gen: v5e
topology: v5e:2x2
jax: 0.10.0
libtpu: 0.0.40
codegen_flags: <defaults>
</compile_context>

<pallas_src>
import jax
import jax.numpy as jnp
from jax.experimental import pallas as pl
from jax.experimental.pallas import tpu as pltpu


def _round_up(x: int, m: int) -> int:
    return ((x + m - 1) // m) * m


def _hw_info():
    """(vmem_capacity_bytes, is_v7x).  Conservative fallback if query fails."""
    try:
        info = pltpu.get_tpu_info()
        cap = int(getattr(info, "vmem_capacity_bytes", 0)) or None
    except Exception:
        cap = None
    if cap is None:
        return 64 * 1024 * 1024, False   # conservative VMEM, don't assume 2 TCs
    return cap, cap <= 96 * 1024 * 1024  # 64 MiB/TC => v7x


def _vmem_need(tm, ti, H, comp_isz, out_isz, wbuf=2):
    """Rough VMEM working set for the chosen tiles (double-buffered I/O)."""
    return (2 * tm * H * comp_isz                      # x row tiles
            + wbuf * (H * 2 * ti + ti * H) * comp_isz  # gate|up + down weight tiles
            + 2 * tm * H * out_isz                     # output tiles
            + tm * H * 4)                              # f32 accumulator


# ----------------------------------------------------------------------------
# Kernel
# ----------------------------------------------------------------------------
def ffn_kernel(x_ref, wgu_ref, wd_ref, o_ref, acc_ref):
    # x_ref:   (tm, H)       compute dtype
    # wgu_ref: (H, 2*ti)     fused [gate_k | up_k] weight tile
    # wd_ref:  (ti, H)       down-proj weight tile
    # o_ref:   (tm, H)       output dtype
    # acc_ref: (tm, H) f32   accumulator, persists across the k axis
    k = pl.program_id(1)

    @pl.when(k == 0)
    def _():
        acc_ref[...] = jnp.zeros_like(acc_ref)

    x = x_ref[...]
    # One wide MXU pass computes gate and up projections together.
    gu = jnp.dot(x, wgu_ref[...], preferred_element_type=jnp.float32)  # (tm, 2*ti)
    ti = gu.shape[1] // 2
    gate = gu[:, :ti]           # lane-aligned split (ti is a multiple of 128)
    up = gu[:, ti:]
    hidden = (gate * jax.nn.sigmoid(gate)) * up                        # SwiGLU, f32
    acc_ref[...] += jnp.dot(hidden.astype(x.dtype), wd_ref[...],
                            preferred_element_type=jnp.float32)

    @pl.when(k == pl.num_programs(1) - 1)
    def _():
        o_ref[...] = acc_ref[...].astype(o_ref.dtype)


# ----------------------------------------------------------------------------
# Load-time weight packing (call ONCE, reuse the result every forward call)
# ----------------------------------------------------------------------------
def pack_ffn_weights(wg_t, wu_t, wd_t, *, ti=None, compute_dtype=None):
    """wg_t/wu_t: [H, I] (pre-transposed), wd_t: [I, H].  No bias.

    Returns (wgu, wd_pad, ti): wgu is [H, nk*2*ti] where k-tile j holds
    [gate_j | up_j] side by side; wd_pad is [I_pad, H]; both in compute_dtype.
    """
    H, I = wg_t.shape
    compute_dtype = jnp.dtype(compute_dtype if compute_dtype is not None
                              else wg_t.dtype)
    comp_isz = compute_dtype.itemsize
    cap, _ = _hw_info()
    budget = int(0.8 * cap)

    if ti is None:
        ti = 1024 if cap >= 100 * 1024 * 1024 else 512
    ti = max(128, (int(ti) // 128) * 128)
    ti = min(ti, _round_up(I, 128))
    # Shrink ti (keeps tm large -> arithmetic intensity) until tiles fit.
    while ti > 128 and _vmem_need(512, ti, H, comp_isz, 4) > budget:
        ti = max(128, ((ti // 2) // 128) * 128)

    I_pad = _round_up(I, ti)
    if I_pad != I:
        wg_t = jnp.pad(wg_t, ((0, 0), (0, I_pad - I)))
        wu_t = jnp.pad(wu_t, ((0, 0), (0, I_pad - I)))
        wd_t = jnp.pad(wd_t, ((0, I_pad - I), (0, 0)))
    nk = I_pad // ti
    wgu = jnp.concatenate(
        [wg_t.reshape(H, nk, ti), wu_t.reshape(H, nk, ti)], axis=2
    ).reshape(H, nk * 2 * ti).astype(compute_dtype)
    wd = wd_t.astype(compute_dtype)
    return wgu, wd, ti


# ----------------------------------------------------------------------------
# Forward pass on pre-packed weights
# ----------------------------------------------------------------------------
def feed_forward_packed(x, wgu, wd, ti):
    """x: [B, S, H]; wgu: [H, nk*2*ti]; wd: [I_pad, H] (from pack_ffn_weights)."""
    B, S, H = x.shape
    out_dtype = x.dtype
    compute_dtype = wgu.dtype
    I_pad = wd.shape[0]
    nk = I_pad // ti
    assert wgu.shape == (H, nk * 2 * ti)

    M = B * S
    cap, is_v7x = _hw_info()
    budget = int(0.8 * cap)
    comp_isz = jnp.dtype(compute_dtype).itemsize
    out_isz = jnp.dtype(out_dtype).itemsize

    # ---- row-tile selection --------------------------------------------------
    tm = min(512, _round_up(M, 32))
    while tm > 32 and _vmem_need(tm, ti, H, comp_isz, out_isz) > budget:
        tm = max(32, ((tm // 2) // 32) * 32)
    if is_v7x and M >= 64 and _round_up(M, tm) // tm < 2:
        # 2 TCs per chip: make sure the "parallel" axis has >= 2 row tiles.
        tm = max(32, _round_up((M + 1) // 2, 32))
    M_pad = _round_up(M, tm)

    x2d = x.reshape(M, H).astype(compute_dtype)
    if M_pad != M:
        x2d = jnp.pad(x2d, ((0, M_pad - M), (0, 0)))

    # Optional deeper weight-tile pipelining where VMEM headroom exists.
    w_kwargs = {}
    if (not is_v7x and nk >= 4
            and _vmem_need(tm, ti, H, comp_isz, out_isz, wbuf=3) <= budget):
        w_kwargs = dict(pipeline_mode=pl.Buffered(3))

    grid = (M_pad // tm, nk)
    cost = pl.CostEstimate(
        flops=6 * M * H * I_pad,
        transcendentals=M * I_pad,
        bytes_accessed=(grid[0] * 3 * H * I_pad * comp_isz     # weights re-streamed
                        + M * H * (comp_isz + out_isz)),       # x read + out write
    )

    out2d = pl.pallas_call(
        ffn_kernel,
        out_shape=jax.ShapeDtypeStruct((M_pad, H), out_dtype),
        grid_spec=pltpu.PrefetchScalarGridSpec(
            num_scalar_prefetch=0,
            grid=grid,
            in_specs=[
                pl.BlockSpec((tm, H), lambda i, k: (i, 0)),               # x rows
                pl.BlockSpec((H, 2 * ti), lambda i, k: (0, k), **w_kwargs),  # gate|up
                pl.BlockSpec((ti, H), lambda i, k: (k, 0), **w_kwargs),      # down
            ],
            out_specs=pl.BlockSpec((tm, H), lambda i, k: (i, 0)),
            scratch_shapes=[pltpu.VMEM((tm, H), jnp.float32)],
        ),
        compiler_params=pltpu.CompilerParams(
            dimension_semantics=("parallel", "arbitrary"),
            vmem_limit_bytes=budget,
        ),
        cost_estimate=cost,
    )(x2d, wgu, wd)

    return out2d[:M].reshape(B, S, H)


def feed_forward(x, wg_t, wu_t, wd_t, *, ti=None, compute_dtype=None):
    """Convenience one-shot wrapper.  In production, call pack_ffn_weights()
    once at load time and reuse feed_forward_packed() per call."""
    wgu, wd, ti = pack_ffn_weights(wg_t, wu_t, wd_t, ti=ti,
                                   compute_dtype=compute_dtype)
    return feed_forward_packed(x, wgu, wd, ti)


def reference(x, wg_t, wu_t, wd_t):
    g = x @ wg_t
    u = x @ wu_t
    return (jax.nn.silu(g) * u) @ wd_t


if __name__ == "__main__":
    key = jax.random.PRNGKey(0)

    # ---- test 1: f32 compute, single k step, M and I padding ---------------
    B, S, H, I = 2, 8, 32, 64
    kx, kg, ku, kd, key = jax.random.split(key, 5)
    x = jax.random.normal(kx, (B, S, H), dtype=jnp.float32)
    sg = 1.0 / jnp.sqrt(H)
    sd = 1.0 / jnp.sqrt(I)
    wg_t = jax.random.uniform(kg, (H, I), jnp.float32, -sg, sg)
    wu_t = jax.random.uniform(ku, (H, I), jnp.float32, -sg, sg)
    wd_t = jax.random.uniform(kd, (I, H), jnp.float32, -sd, sd)

    wgu, wd, ti = pack_ffn_weights(wg_t, wu_t, wd_t)        # pack once (hoisted)
    out = jax.block_until_ready(feed_forward_packed(x, wgu, wd, ti))
    ref = reference(x, wg_t, wu_t, wd_t)
    assert out.shape == (B, S, H)
    assert jnp.allclose(out, ref, atol=2e-4, rtol=2e-4), \
        f"f32 max err {jnp.abs(out - ref).max()}"

    # ---- test 2: bf16 compute, multi-k accumulation (nk=2) + padding --------
    B, S, H, I = 2, 24, 128, 200            # I % 128 != 0, ti=128 -> nk=2
    kx, kg, ku, kd, key = jax.random.split(key, 5)
    x = jax.random.normal(kx, (B, S, H), dtype=jnp.float32)
    sg = 1.0 / jnp.sqrt(H)
    sd = 1.0 / jnp.sqrt(I)
    wg_t = jax.random.uniform(kg, (H, I), jnp.float32, -sg, sg)
    wu_t = jax.random.uniform(ku, (H, I), jnp.float32, -sg, sg)
    wd_t = jax.random.uniform(kd, (I, H), jnp.float32, -sd, sd)

    wgu, wd, ti = pack_ffn_weights(wg_t, wu_t, wd_t, ti=128,
                                   compute_dtype=jnp.bfloat16)
    out = jax.block_until_ready(feed_forward_packed(x, wgu, wd, ti))
    # Reference in f32 with the same bf16 input quantization.
    q = lambda a: a.astype(jnp.bfloat16).astype(jnp.float32)
    ref = reference(q(x), q(wg_t), q(wu_t), q(wd_t))
    assert out.shape == (B, S, H)
    assert jnp.allclose(out, ref, atol=2e-2, rtol=2e-2), \
        f"bf16 max err {jnp.abs(out - ref).max()}"

    print("KERNEL_OK")
</pallas_src>

<mosaic_0001>
module attributes {stable_mosaic.version = 11 : i64} {
  func.func @ffn_kernel(%arg0: i32, %arg1: i32, %arg2: memref<32x32xf32, #tpu.memory_space<vmem>>, %arg3: memref<32x256xf32, #tpu.memory_space<vmem>>, %arg4: memref<128x32xf32, #tpu.memory_space<vmem>>, %arg5: memref<32x32xf32, #tpu.memory_space<vmem>>, %arg6: memref<32x32xf32, #tpu.memory_space<vmem>>) attributes {dimension_semantics = [#tpu.dimension_semantics<parallel>, #tpu.dimension_semantics<arbitrary>], iteration_bounds = array<i64: 1, 1>, scalar_prefetch = 0 : i64, scratch_operands = 1 : i64, tpu.core_type = #tpu.core_type<tc>, window_params = [{transform_indices = @transform_0, window_bounds = array<i64: 32, 32>}, {transform_indices = @transform_1, window_bounds = array<i64: 32, 256>}, {transform_indices = @transform_2, window_bounds = array<i64: 128, 32>}, {transform_indices = @transform_3, window_bounds = array<i64: 32, 32>}]} {
    %c0_i32 = arith.constant 0 : i32
    %0 = arith.cmpi eq, %arg1, %c0_i32 : i32
    %1 = arith.extui %0 : i1 to i32
    %c0_i32_0 = arith.constant 0 : i32
    %2 = arith.cmpi ne, %1, %c0_i32_0 : i32
    scf.if %2 {
      %cst_14 = arith.constant 0.000000e+00 : f32
      %23 = vector.broadcast %cst_14 : f32 to vector<32x32xf32>
      %c0_15 = arith.constant 0 : index
      %c0_16 = arith.constant 0 : index
      %24 = vector.load %arg6[%c0_15, %c0_16] : memref<32x32xf32, #tpu.memory_space<vmem>>, vector<32x32xf32>
      tpu.vector_store %arg6[%c0_15, %c0_16], %23 {strides = array<i32>} : memref<32x32xf32, #tpu.memory_space<vmem>>, vector<32x32xf32>,
    } else {
    }
    %c0 = arith.constant 0 : index
    %c0_1 = arith.constant 0 : index
    %3 = vector.load %arg2[%c0, %c0_1] : memref<32x32xf32, #tpu.memory_space<vmem>>, vector<32x32xf32>
    %c0_2 = arith.constant 0 : index
    %c0_3 = arith.constant 0 : index
    %4 = vector.load %arg3[%c0_2, %c0_3] : memref<32x256xf32, #tpu.memory_space<vmem>>, vector<32x256xf32>
    %cst = arith.constant dense<0.000000e+00> : vector<32x256xf32>
    %5 = tpu.matmul %3, %4, %cst {dimension_numbers = #tpu.dot_dimension_numbers<[1], [0], [0], [1], [0, 0, 1, 1], [], []>} : vector<32x32xf32>, vector<32x256xf32>, vector<32x256xf32> -> vector<32x256xf32>
    %6 = vector.extract_strided_slice %5 {offsets = [0, 0], sizes = [32, 128], strides = [1, 1]} : vector<32x256xf32> to vector<32x128xf32>
    %7 = vector.extract_strided_slice %5 {offsets = [0, 128], sizes = [32, 128], strides = [1, 1]} : vector<32x256xf32> to vector<32x128xf32>
    %8 = arith.negf %6 : vector<32x128xf32>
    %9 = math.exp %8 : vector<32x128xf32>
    %cst_4 = arith.constant 1.000000e+00 : f32
    %10 = vector.broadcast %cst_4 : f32 to vector<32x128xf32>
    %11 = arith.addf %10, %9 : vector<32x128xf32>
    %12 = arith.divf %10, %11 : vector<32x128xf32>
    %13 = arith.mulf %6, %12 : vector<32x128xf32>
    %14 = arith.mulf %13, %7 : vector<32x128xf32>
    %c0_5 = arith.constant 0 : index
    %c0_6 = arith.constant 0 : index
    %15 = vector.load %arg6[%c0_5, %c0_6] : memref<32x32xf32, #tpu.memory_space<vmem>>, vector<32x32xf32>
    %c0_7 = arith.constant 0 : index
    %c0_8 = arith.constant 0 : index
    %16 = vector.load %arg4[%c0_7, %c0_8] : memref<128x32xf32, #tpu.memory_space<vmem>>, vector<128x32xf32>
    %cst_9 = arith.constant dense<0.000000e+00> : vector<32x32xf32>
    %17 = tpu.matmul %14, %16, %cst_9 {dimension_numbers = #tpu.dot_dimension_numbers<[1], [0], [0], [1], [0, 0, 1, 1], [], []>} : vector<32x128xf32>, vector<128x32xf32>, vector<32x32xf32> -> vector<32x32xf32>
    %18 = arith.addf %15, %17 : vector<32x32xf32>
    %c0_10 = arith.constant 0 : index
    %c0_11 = arith.constant 0 : index
    %19 = vector.load %arg6[%c0_10, %c0_11] : memref<32x32xf32, #tpu.memory_space<vmem>>, vector<32x32xf32>
    tpu.vector_store %arg6[%c0_10, %c0_11], %18 {strides = array<i32>} : memref<32x32xf32, #tpu.memory_space<vmem>>, vector<32x32xf32>,
    %c0_i32_12 = arith.constant 0 : i32
    %20 = arith.cmpi eq, %arg1, %c0_i32_12 : i32
    %21 = arith.extui %20 : i1 to i32
    %c0_i32_13 = arith.constant 0 : i32
    %22 = arith.cmpi ne, %21, %c0_i32_13 : i32
    scf.if %22 {
      %c0_14 = arith.constant 0 : index
      %c0_15 = arith.constant 0 : index
      %23 = vector.load %arg6[%c0_14, %c0_15] : memref<32x32xf32, #tpu.memory_space<vmem>>, vector<32x32xf32>
      %c0_16 = arith.constant 0 : index
      %c0_17 = arith.constant 0 : index
      %24 = vector.load %arg5[%c0_16, %c0_17] : memref<32x32xf32, #tpu.memory_space<vmem>>, vector<32x32xf32>
      tpu.vector_store %arg5[%c0_16, %c0_17], %23 {strides = array<i32>} : memref<32x32xf32, #tpu.memory_space<vmem>>, vector<32x32xf32>,
    } else {
    }
    return
  }
  func.func @transform_0(%arg0: i32, %arg1: i32) -> (i32, i32) {
    %c0_i32 = arith.constant 0 : i32
    %c0_i32_0 = arith.constant 0 : i32
    return %arg0, %c0_i32 : i32, i32
  }
  func.func @transform_1(%arg0: i32, %arg1: i32) -> (i32, i32) {
    %c0_i32 = arith.constant 0 : i32
    %c0_i32_0 = arith.constant 0 : i32
    return %c0_i32, %arg1 : i32, i32
  }
  func.func @transform_2(%arg0: i32, %arg1: i32) -> (i32, i32) {
    %c0_i32 = arith.constant 0 : i32
    %c0_i32_0 = arith.constant 0 : i32
    return %arg1, %c0_i32 : i32, i32
  }
  func.func @transform_3(%arg0: i32, %arg1: i32) -> (i32, i32) {
    %c0_i32 = arith.constant 0 : i32
    %c0_i32_0 = arith.constant 0 : i32
    return %arg0, %c0_i32 : i32, i32
  }
}

</mosaic_0001>

<llo_original>
// kernel: tpu_custom_call.1
$region0: #{tpu_custom_call.1}
  #allocation0 [shape = 'u32[]', space=smem, size = 0x4, offset = 0x4, fixed_abs, tag = 'smem constant byte address 0x4 - core index']
  #allocation1 [shape = 'u32[72,128]{1,0:T(1,128)}', space=vmem, size = 0x9000, scoped, tag = 'internal scratch']
  #allocation2 [shape = 'f32[32,32]{1,0:T(8,128)}', space=vmem, size = 0x4000, scoped, tag = 'scratch operand']
  %s0 = inlined_call_operand.vmem [shape: f32[32,32], index: 0, kind: input, shape index: {}]
  %s1 = inlined_call_operand.vmem [shape: f32[32,256], index: 1, kind: input, shape index: {}]
  %s2 = inlined_call_operand.vmem [shape: f32[128,32], index: 2, kind: input, shape index: {}]
  %s3 = inlined_call_operand.hbm [shape: f32[32,32], index: 3, kind: output, shape index: {}]
  %s4 = sld [smem:[#allocation0]]
  $region30: #{tpu_custom_call.1} parent=0
    _
  %s6 = ssub.s32 1, %s4
  %s7 = scalar_select 0, %s6, %s4
  $region1: #{tpu_custom_call.1} parent=0
    #allocation3 [shape = 'u8[16384]{0}', space=vmem, size = 0x4000, scoped, tag = 'output window, operand 0, single buffered']
    #allocation4 [shape = 's32[1]{0}', space=sflag, size = 0x4, scoped, tag = 'scoped memory for tpu_custom_call.1']
    %8 = vsyncpa [#allocation4], 0
    // Predicated region
    $region2: #{tpu_custom_call.1} parent=1 // pred_check
      _
    $region3: #{tpu_custom_call.1} parent=1 // pred_check_branch
      %10 = sbr.rel (0) target = $region5
    $region4: #{tpu_custom_call.1} parent=1 // pred_region
      _
    $region5: #{tpu_custom_call.1} parent=1 // pred_fallthru
      _
    // Predicated region
    $region6: #{tpu_custom_call.1} parent=1 // pred_check
      _
    $region7: #{tpu_custom_call.1} parent=1 // pred_check_branch
      %12 = sbr.rel (0) target = $region9
    $region8: #{tpu_custom_call.1} parent=1 // pred_region
      _
    $region9: #{tpu_custom_call.1} parent=1 // pred_fallthru
      _
    // Predicated region
    $region10: #{tpu_custom_call.1} parent=1 // pred_check
      _
    $region11: #{tpu_custom_call.1} parent=1 // pred_check_branch
      %14 = sbr.rel (0) target = $region13
    $region12: #{tpu_custom_call.1} parent=1 // pred_region
      _
    $region13: #{tpu_custom_call.1} parent=1 // pred_fallthru
      _
    %p15 = scmp.eq.s32.totalorder 0, 0
    // Predicated region
    $region14: #{tpu_custom_call.1} parent=1 // pred_check
      %p16 = pneg %p15
    $region15: #{tpu_custom_call.1} parent=1 // pred_check_branch
      %18 = sbr.rel (%p16) target = $region17
    $region16: #{tpu_custom_call.1} parent=1 // pred_region
      %vm19 = vcmask 261120
      %20 = vst.msk [vmem:[#allocation2] sm:$0xff] %vm19, 0.0
      %21 = vst.msk [vmem:[#allocation2 + $0x8] sm:$0xff] %vm19, 0.0
      %22 = vst.msk [vmem:[#allocation2 + $0x10] sm:$0xff] %vm19, 0.0
      %23 = vst.msk [vmem:[#allocation2 + $0x18] sm:$0xff] %vm19, 0.0
    $region17: #{tpu_custom_call.1} parent=1 // pred_fallthru
      _
    %v24 = vld [vmem:[%s0] sm:$0xff]
    %v25 = vld [vmem:[%s0 + $0x8] sm:$0xff]
    %v26 = vld [vmem:[%s0 + $0x10] sm:$0xff]
    %v27 = vld [vmem:[%s0 + $0x18] sm:$0xff]
    %v28 = vld [vmem:[%s1] sm:$0xff]
    %v29 = vld [vmem:[%s1 + $0x8] sm:$0xff]
    %v30 = vld [vmem:[%s1 + $0x10] sm:$0xff]
    %v31 = vld [vmem:[%s1 + $0x18] sm:$0xff]
    %v32 = vld [vmem:[%s1 + $0x20] sm:$0xff]
    %v33 = vld [vmem:[%s1 + $0x28] sm:$0xff]
    %v34 = vld [vmem:[%s1 + $0x30] sm:$0xff]
    %v35 = vld [vmem:[%s1 + $0x38] sm:$0xff]
    %vm36 = vcmask 261120
    %v38 = vsel %vm36, %v24, 0
    %v41 = vsel %vm36, %v25, 0
    %v44 = vsel %vm36, %v26, 0
    %v47 = vsel %vm36, %v27, 0
    %49 = vmatpush.msra.mxu0 0.0
    %50 = vmatpush.msra.mxu0 0.0
    %51 = vmatpush.msra.mxu0 0.0
    %52 = vmatpush.msra.mxu0 0.0
    %53 = vmatpush.msra.mxu0 0.0
    %54 = vmatpush.msra.mxu0 0.0
    %55 = vmatpush.msra.mxu0 0.0
    %56 = vmatpush.msra.mxu0 0.0
    %57 = vmatpush.msra.mxu0 0.0
    %58 = vmatpush.msra.mxu0 0.0
    %59 = vmatpush.msra.mxu0 0.0
    %60 = vmatpush.msra.mxu0 0.0
    %61 = vmatpush.msra.mxu0 %v34
    %62 = vmatpush.msra.mxu0 %v32
    %63 = vmatpush.msra.mxu0 %v30
    %64 = vmatpush.msra.mxu0 %v28
    %65 = vmatmul.f32.gmra.mxu0 %v38
    %v66 = vpop.f32.mrf.mxu0
    %v67 = vadd.f32 0.0, %v66
    %68 = vmatmul.f32.gmra.mxu0 %v41
    %v69 = vpop.f32.mrf.mxu0
    %v70 = vadd.f32 0.0, %v69
    %71 = vmatmul.f32.gmra.mxu0 %v44
    %v72 = vpop.f32.mrf.mxu0
    %v73 = vadd.f32 0.0, %v72
    %74 = vmatmul.f32.gmra.mxu0 %v47
    %v75 = vpop.f32.mrf.mxu0
    %v76 = vadd.f32 0.0, %v75
    %77 = vdwg.mxu0
    %78 = vmatpush.msra.mxu0 0.0
    %79 = vmatpush.msra.mxu0 0.0
    %80 = vmatpush.msra.mxu0 0.0
    %81 = vmatpush.msra.mxu0 0.0
    %82 = vmatpush.msra.mxu0 0.0
    %83 = vmatpush.msra.mxu0 0.0
    %84 = vmatpush.msra.mxu0 0.0
    %85 = vmatpush.msra.mxu0 0.0
    %86 = vmatpush.msra.mxu0 0.0
    %87 = vmatpush.msra.mxu0 0.0
    %88 = vmatpush.msra.mxu0 0.0
    %89 = vmatpush.msra.mxu0 0.0
    %90 = vmatpush.msra.mxu0 %v35
    %91 = vmatpush.msra.mxu0 %v33
    %92 = vmatpush.msra.mxu0 %v31
    %93 = vmatpush.msra.mxu0 %v29
    %94 = vmatmul.f32.gmra.mxu0 %v38
    %v95 = vpop.f32.mrf.mxu0
    %v96 = vadd.f32 0.0, %v95
    %97 = vmatmul.f32.gmra.mxu0 %v41
    %v98 = vpop.f32.mrf.mxu0
    %v99 = vadd.f32 0.0, %v98
    %100 = vmatmul.f32.gmra.mxu0 %v44
    %v101 = vpop.f32.mrf.mxu0
    %v102 = vadd.f32 0.0, %v101
    %103 = vmatmul.f32.gmra.mxu0 %v47
    %v104 = vpop.f32.mrf.mxu0
    %v105 = vadd.f32 0.0, %v104
    %106 = vdwg.mxu0
    %v107 = vxor.u32 %v67, 2147483648
    %v108 = vxor.u32 %v70, 2147483648
    %v109 = vxor.u32 %v73, 2147483648
    %v110 = vxor.u32 %v76, 2147483648
    %v111 = vmul.f32 %v107, 1.442695
    %v112 = vpow.pop %v111
    %v113 = vmul.f32 %v108, 1.442695
    %v114 = vpow.pop %v113
    %v115 = vmul.f32 %v109, 1.442695
    %v116 = vpow.pop %v115
    %v117 = vmul.f32 %v110, 1.442695
    %v118 = vpow.pop %v117
    %v119 = vadd.f32 %v112, 1.0
    %v120 = vadd.f32 %v114, 1.0
    %v121 = vadd.f32 %v116, 1.0
    %v122 = vadd.f32 %v118, 1.0
    %v123 = vrcp.pop %v119
    %v124 = vmul.f32 %v119, %v123
    %v125 = vsub.f32 1.0, %v124
    %v126 = vmul.f32 %v123, %v125
    %v127 = vadd.f32 %v123, %v126
    %vm128 = vweird.f32 %v119
    %vm129 = vweird.f32 %v123
    %vm130 = vmor %vm128, %vm129
    %v131 = vsel %vm130, %v123, %v127
    %v132 = vand.u32 2147483647, %v119
    %vm133 = vcmp.eq.f32.partialorder %v132, 8.507059e+37
    %v134 = vand.u32 %v119, 2147483648
    %v135 = vor.u32 1.1754944e-38, %v134
    %v136 = vsel %vm133, %v135, %v131
    %v137 = vmul.f32 1.0, %v136
    %v138 = vrcp.pop %v120
    %v139 = vmul.f32 %v120, %v138
    %v140 = vsub.f32 1.0, %v139
    %v141 = vmul.f32 %v138, %v140
    %v142 = vadd.f32 %v138, %v141
    %vm143 = vweird.f32 %v120
    %vm144 = vweird.f32 %v138
    %vm145 = vmor %vm143, %vm144
    %v146 = vsel %vm145, %v138, %v142
    %v147 = vand.u32 2147483647, %v120
    %vm148 = vcmp.eq.f32.partialorder %v147, 8.507059e+37
    %v149 = vand.u32 %v120, 2147483648
    %v150 = vor.u32 1.1754944e-38, %v149
    %v151 = vsel %vm148, %v150, %v146
    %v152 = vmul.f32 1.0, %v151
    %v153 = vrcp.pop %v121
    %v154 = vmul.f32 %v121, %v153
    %v155 = vsub.f32 1.0, %v154
    %v156 = vmul.f32 %v153, %v155
    %v157 = vadd.f32 %v153, %v156
    %vm158 = vweird.f32 %v121
    %vm159 = vweird.f32 %v153
    %vm160 = vmor %vm158, %vm159
    %v161 = vsel %vm160, %v153, %v157
    %v162 = vand.u32 2147483647, %v121
    %vm163 = vcmp.eq.f32.partialorder %v162, 8.507059e+37
    %v164 = vand.u32 %v121, 2147483648
    %v165 = vor.u32 1.1754944e-38, %v164
    %v166 = vsel %vm163, %v165, %v161
    %v167 = vmul.f32 1.0, %v166
    %v168 = vrcp.pop %v122
    %v169 = vmul.f32 %v122, %v168
    %v170 = vsub.f32 1.0, %v169
    %v171 = vmul.f32 %v168, %v170
    %v172 = vadd.f32 %v168, %v171
    %vm173 = vweird.f32 %v122
    %vm174 = vweird.f32 %v168
    %vm175 = vmor %vm173, %vm174
    %v176 = vsel %vm175, %v168, %v172
    %v177 = vand.u32 2147483647, %v122
    %vm178 = vcmp.eq.f32.partialorder %v177, 8.507059e+37
    %v179 = vand.u32 %v122, 2147483648
    %v180 = vor.u32 1.1754944e-38, %v179
    %v181 = vsel %vm178, %v180, %v176
    %v182 = vmul.f32 1.0, %v181
    %v183 = vmul.f32 %v67, %v137
    %v184 = vmul.f32 %v70, %v152
    %v185 = vmul.f32 %v73, %v167
    %v186 = vmul.f32 %v76, %v182
    %v187 = vmul.f32 %v183, %v96
    %v188 = vmul.f32 %v184, %v99
    %v189 = vmul.f32 %v185, %v102
    %v190 = vmul.f32 %v186, %v105
    %v191 = vld [vmem:[#allocation2] sm:$0xff]
    %v192 = vld [vmem:[#allocation2 + $0x8] sm:$0xff]
    %v193 = vld [vmem:[#allocation2 + $0x10] sm:$0xff]
    %v194 = vld [vmem:[#allocation2 + $0x18] sm:$0xff]
    %v195 = vld [vmem:[%s2] sm:$0xff]
    %v196 = vld [vmem:[%s2 + $0x8] sm:$0xff]
    %v197 = vld [vmem:[%s2 + $0x10] sm:$0xff]
    %v198 = vld [vmem:[%s2 + $0x18] sm:$0xff]
    %v199 = vld [vmem:[%s2 + $0x20] sm:$0xff]
    %v200 = vld [vmem:[%s2 + $0x28] sm:$0xff]
    %v201 = vld [vmem:[%s2 + $0x30] sm:$0xff]
    %v202 = vld [vmem:[%s2 + $0x38] sm:$0xff]
    %v203 = vld [vmem:[%s2 + $0x40] sm:$0xff]
    %v204 = vld [vmem:[%s2 + $0x48] sm:$0xff]
    %v205 = vld [vmem:[%s2 + $0x50] sm:$0xff]
    %v206 = vld [vmem:[%s2 + $0x58] sm:$0xff]
    %v207 = vld [vmem:[%s2 + $0x60] sm:$0xff]
    %v208 = vld [vmem:[%s2 + $0x68] sm:$0xff]
    %v209 = vld [vmem:[%s2 + $0x70] sm:$0xff]
    %v210 = vld [vmem:[%s2 + $0x78] sm:$0xff]
    %211 = vmatpush.msra.mxu0 %v210
    %212 = vmatpush.msra.mxu0 %v209
    %213 = vmatpush.msra.mxu0 %v208
    %214 = vmatpush.msra.mxu0 %v207
    %215 = vmatpush.msra.mxu0 %v206
    %216 = vmatpush.msra.mxu0 %v205
    %217 = vmatpush.msra.mxu0 %v204
    %218 = vmatpush.msra.mxu0 %v203
    %219 = vmatpush.msra.mxu0 %v202
    %220 = vmatpush.msra.mxu0 %v201
    %221 = vmatpush.msra.mxu0 %v200
    %222 = vmatpush.msra.mxu0 %v199
    %223 = vmatpush.msra.mxu0 %v198
    %224 = vmatpush.msra.mxu0 %v197
    %225 = vmatpush.msra.mxu0 %v196
    %226 = vmatpush.msra.mxu0 %v195
    %227 = vmatmul.f32.gmra.mxu0 %v187
    %v228 = vpop.f32.mrf.mxu0
    %v229 = vadd.f32 0.0, %v228
    %230 = vmatmul.f32.gmra.mxu0 %v188
    %v231 = vpop.f32.mrf.mxu0
    %v232 = vadd.f32 0.0, %v231
    %233 = vmatmul.f32.gmra.mxu0 %v189
    %v234 = vpop.f32.mrf.mxu0
    %v235 = vadd.f32 0.0, %v234
    %236 = vmatmul.f32.gmra.mxu0 %v190
    %v237 = vpop.f32.mrf.mxu0
    %v238 = vadd.f32 0.0, %v237
    %239 = vdwg.mxu0
    %v240 = vadd.f32 %v191, %v229
    %v241 = vadd.f32 %v192, %v232
    %v242 = vadd.f32 %v193, %v235
    %v243 = vadd.f32 %v194, %v238
    %244 = vst.msk [vmem:[#allocation2] sm:$0xff] %vm36, %v240
    %245 = vst.msk [vmem:[#allocation2 + $0x8] sm:$0xff] %vm36, %v241
    %246 = vst.msk [vmem:[#allocation2 + $0x10] sm:$0xff] %vm36, %v242
    %247 = vst.msk [vmem:[#allocation2 + $0x18] sm:$0xff] %vm36, %v243
    // Predicated region
    $region18: #{tpu_custom_call.1} parent=1 // pred_check
      %p248 = pneg %p15
    $region19: #{tpu_custom_call.1} parent=1 // pred_check_branch
      %250 = sbr.rel (%p248) target = $region21
    $region20: #{tpu_custom_call.1} parent=1 // pred_region
      %v251 = vld [vmem:[#allocation2] sm:$0xff]
      %v252 = vld [vmem:[#allocation2 + $0x8] sm:$0xff]
      %v253 = vld [vmem:[#allocation2 + $0x10] sm:$0xff]
      %v254 = vld [vmem:[#allocation2 + $0x18] sm:$0xff]
      %255 = vst.msk [vmem:[#allocation3] sm:$0xff] %vm36, %v251
      %256 = vst.msk [vmem:[#allocation3 + $0x8] sm:$0xff] %vm36, %v252
      %257 = vst.msk [vmem:[#allocation3 + $0x10] sm:$0xff] %vm36, %v253
      %258 = vst.msk [vmem:[#allocation3 + $0x18] sm:$0xff] %vm36, %v254
    $region21: #{tpu_custom_call.1} parent=1 // pred_fallthru
      _
    // Predicated region
    $region22: #{tpu_custom_call.1} parent=1 // pred_check
      _
    $region23: #{tpu_custom_call.1} parent=1 // pred_check_branch
      %260 = sbr.rel (0) target = $region25
    $region24: #{tpu_custom_call.1} parent=1 // pred_region
      %262 = vsyncadd [#allocation4], 0
      %s263 = sshll.u32 [#allocation3], 4
      %s264 = int_to_ptr.vmem [resolvable:$true] %s263
      %s265 = sshll.u32 %s3, 4
      %s266 = int_to_ptr.hbm [resolvable:$true] %s265
      %271 = dma.vmem_to_hbm [thread:$0]  %s264, 512, %s266, [#allocation4], 128, 128, 8
    $region25: #{tpu_custom_call.1} parent=1 // pred_fallthru
      _
    // Predicated region
    $region26: #{tpu_custom_call.1} parent=1 // pred_check
      _
    $region27: #{tpu_custom_call.1} parent=1 // pred_check_branch
      %273 = sbr.rel (0) target = $region29
    $region28: #{tpu_custom_call.1} parent=1 // pred_region
      %275 = dma.done [#allocation4], 512
    $region29: #{tpu_custom_call.1} parent=1 // pred_fallthru
      _
    %276 = vsyncpa [#allocation4], 1

</llo_original>
